<compile_context>
chip_gen: v5e
topology: v5e:2x2
jax: 0.10.0
libtpu: 0.0.40
codegen_flags: <defaults>
</compile_context>

<pallas_src>
import math
import functools

import jax
import jax.numpy as jnp
from jax.experimental import pallas as pl
from jax.experimental.pallas import tpu as pltpu


def _cumsum_norm_kernel(tri_h_ref, tri_w_ref, mask_ref, x_ref, y_ref):
    """One batch element per grid step.

    tri_h_ref : (H, H) bf16 lower-triangular ones  (resident across the grid)
    tri_w_ref : (W, W) bf16 upper-triangular ones  (resident across the grid)
    mask_ref  : (H, W) int32 (1 = masked / padded, 0 = valid), batch dim squeezed
    x_ref     : (H, W) f32 normalized x_embed
    y_ref     : (H, W) f32 normalized y_embed
    """
    nm = (1 - mask_ref[...]).astype(jnp.bfloat16)  # not_mask, exactly 0/1 in bf16
    H, W = nm.shape

    # cumsum along rows (y): lower-triangular ones matmul on the left (MXU, f32 acc).
    y_cum = jnp.dot(tri_h_ref[...], nm, preferred_element_type=jnp.float32)  # (H, W)
    # cumsum along cols (x): upper-triangular ones matmul on the right.
    x_cum = jnp.dot(nm, tri_w_ref[...], preferred_element_type=jnp.float32)  # (H, W)

    eps = 1e-6
    y_ref[...] = (y_cum - 0.5) / (y_cum[H - 1:H, :] + eps)   # divide by last row
    x_ref[...] = (x_cum - 0.5) / (x_cum[:, W - 1:W] + eps)   # divide by last col


def _sine_bank_kernel(x_ref, y_ref, out_ref, *, depth, factor, sine_type):
    """Grid = (B, HW // thw); one (batch, spatial-tile) per step.

    x_ref, y_ref : (B, thw) f32 spatial tile (all batch rows); slice row b.
    out_ref      : (C, thw) f32 lane-dense output block; C = 4 * depth.

    Channel order (NCHW after the wrapper reshape):
      [sin(b1*f*pi*x), sin(b1*f*pi*y), ..., sin(bD*f*pi*x), sin(bD*f*pi*y),
       cos(b1*f*pi*x), cos(b1*f*pi*y), ..., cos(bD*f*pi*x), cos(bD*f*pi*y)]
    """
    b = pl.program_id(0)
    a0 = float(factor) * math.pi

    theta_x = a0 * x_ref[pl.ds(b, 1), :]      # (1, thw)
    theta_y = a0 * y_ref[pl.ds(b, 1), :]      # (1, thw)

    # Only transcendentals in the whole kernel: 4 sin + 4 cos planes (EUP).
    s1x, c1x = jnp.sin(theta_x), jnp.cos(theta_x)
    s1y, c1y = jnp.sin(theta_y), jnp.cos(theta_y)

    sx, cx, sy, cy = s1x, c1x, s1y, c1y
    half = 2 * depth
    for i in range(depth):
        if i > 0:
            if sine_type == 'lin_sine':
                # angle addition: k*theta = (k-1)*theta + theta   (VPU mul/add only)
                sx, cx = sx * c1x + cx * s1x, cx * c1x - sx * s1x
                sy, cy = sy * c1y + cy * s1y, cy * c1y - sy * s1y
            else:  # exp_sine: double angle
                sx, cx = 2.0 * sx * cx, cx * cx - sx * sx
                sy, cy = 2.0 * sy * cy, cy * cy - sy * sy
        # Direct per-channel stores (no stack/concat, 1-2 live planes per coord).
        out_ref[2 * i:2 * i + 1, :] = sx
        out_ref[2 * i + 1:2 * i + 2, :] = sy
        out_ref[half + 2 * i:half + 2 * i + 1, :] = cx
        out_ref[half + 2 * i + 1:half + 2 * i + 2, :] = cy


def _pick_hw_tile(HW, C, budget_bytes=8 * 1024 * 1024):
    """Largest spatial tile (divisor of HW, multiple of 128 lanes) whose
    double-buffered (C, thw) f32 output block fits the budget."""
    if C * HW * 4 * 2 <= budget_bytes or HW % 128 != 0:
        return HW                      # small enough, or cannot split on lane boundary
    best = 128
    t = 128
    while t <= HW:
        if HW % t == 0 and C * t * 4 * 2 <= budget_bytes:
            best = t
        t += 128
    return best
    # TODO(synk): if C itself becomes huge (C * 128 * 4 * 2 > budget) also tile the
    # channel axis; not needed for any realistic num_pos_feats.


def position_embedding_sine(mask, *, num_pos_feats=8, sine_type='lin_sine',
                            avoid_aliasing=False, max_spatial_resolution=None):
    """mask: (B, H, W) bool (or 0/1). Returns (B, 2*num_pos_feats, H, W) float32."""
    B, H, W = mask.shape
    depth = num_pos_feats // 2
    C = 4 * depth
    HW = H * W

    if sine_type not in ('lin_sine', 'exp_sine'):
        raise ValueError(sine_type)

    if avoid_aliasing:
        if max_spatial_resolution is None:
            raise ValueError('Please specify the maxima spatial resolution')
        factor = max_spatial_resolution / depth
    else:
        factor = 1.0

    mask_i32 = mask.astype(jnp.int32)

    # Triangular cumsum operators, built once (XLA constant) and kept resident in
    # VMEM across the batch grid via a constant index_map.  bf16 is exact here
    # (values are 0/1) and runs at native MXU rate; accumulation stays f32.
    tri_h = (jax.lax.broadcasted_iota(jnp.int32, (H, H), 1)
             <= jax.lax.broadcasted_iota(jnp.int32, (H, H), 0)).astype(jnp.bfloat16)
    tri_w = (jax.lax.broadcasted_iota(jnp.int32, (W, W), 0)
             <= jax.lax.broadcasted_iota(jnp.int32, (W, W), 1)).astype(jnp.bfloat16)

    # ---- kernel 1: not_mask -> cumsum -> normalized x/y embeddings (small I/O) ----
    x_embed, y_embed = pl.pallas_call(
        _cumsum_norm_kernel,
        out_shape=(jax.ShapeDtypeStruct((B, H, W), jnp.float32),
                   jax.ShapeDtypeStruct((B, H, W), jnp.float32)),
        grid=(B,),
        in_specs=[pl.BlockSpec((H, H), lambda b: (0, 0)),
                  pl.BlockSpec((W, W), lambda b: (0, 0)),
                  pl.BlockSpec((None, H, W), lambda b: (b, 0, 0))],
        out_specs=(pl.BlockSpec((None, H, W), lambda b: (b, 0, 0)),
                   pl.BlockSpec((None, H, W), lambda b: (b, 0, 0))),
        compiler_params=pltpu.CompilerParams(
            dimension_semantics=("parallel",)),
    )(tri_h, tri_w, mask_i32)

    # Free row-major reshapes: present lane-dense (B, HW) inputs to the heavy kernel.
    x_flat = x_embed.reshape(B, HW)
    y_flat = y_embed.reshape(B, HW)

    # ---- kernel 2: lane-dense sin/cos channel bank, (B, C, HW) output ----
    thw = _pick_hw_tile(HW, C)
    n_t = HW // thw
    kernel2 = functools.partial(_sine_bank_kernel, depth=depth,
                                factor=factor, sine_type=sine_type)
    out_flat = pl.pallas_call(
        kernel2,
        out_shape=jax.ShapeDtypeStruct((B, C, HW), jnp.float32),
        grid=(B, n_t),
        in_specs=[pl.BlockSpec((B, thw), lambda b, t: (0, t)),
                  pl.BlockSpec((B, thw), lambda b, t: (0, t))],
        out_specs=pl.BlockSpec((None, C, thw), lambda b, t: (b, 0, t)),
        compiler_params=pltpu.CompilerParams(
            dimension_semantics=("parallel", "parallel")),
    )(x_flat, y_flat)

    # Free row-major reshape back to NCHW.
    return out_flat.reshape(B, C, H, W)


def _reference(mask, *, num_pos_feats=8, factor=1.0, sine_type='lin_sine'):
    """Pure-JAX transcription of the PyTorch forward, for verification."""
    depth = num_pos_feats // 2
    if sine_type == 'lin_sine':
        bases = [i + 1 for i in range(depth)]
    else:
        bases = [2 ** i for i in range(depth)]
    nm = (~mask).astype(jnp.float32)
    y = jnp.cumsum(nm, axis=1)
    x = jnp.cumsum(nm, axis=2)
    eps = 1e-6
    y = (y - 0.5) / (y[:, -1:, :] + eps)
    x = (x - 0.5) / (x[:, :, -1:] + eps)
    pos = jnp.stack([x, y], axis=-1)  # (B, H, W, 2)
    out = jnp.concatenate(
        [jnp.sin(b * factor * math.pi * pos) for b in bases]
        + [jnp.cos(b * factor * math.pi * pos) for b in bases], axis=-1)
    return jnp.transpose(out, (0, 3, 1, 2))  # NCHW


if __name__ == "__main__":
    key = jax.random.PRNGKey(0)
    B, H, W = 2, 16, 16
    num_pos_feats = 8  # small; module default is 64 -> same code path

    # Boolean padding mask, as in DETR-style usage (True = padded pixel).
    mask = jax.random.bernoulli(key, p=0.2, shape=(B, H, W))

    for sine_type in ('lin_sine', 'exp_sine'):
        out = position_embedding_sine(mask, num_pos_feats=num_pos_feats,
                                      sine_type=sine_type)
        out = jax.block_until_ready(out)
        ref = jax.block_until_ready(
            _reference(mask, num_pos_feats=num_pos_feats, sine_type=sine_type))

        assert out.shape == (B, 2 * num_pos_feats, H, W), out.shape
        assert out.dtype == jnp.float32
        assert bool(jnp.all(jnp.isfinite(out)))  # mirrors the torch.isnan assert
        assert bool(jnp.allclose(out, ref, atol=1e-5, rtol=1e-5)), \
            (sine_type, float(jnp.max(jnp.abs(out - ref))))

    print("KERNEL_OK")
</pallas_src>

<mosaic_0001>
module attributes {stable_mosaic.version = 11 : i64} {
  func.func @_cumsum_norm_kernel(%arg0: i32, %arg1: memref<16x16xbf16, #tpu.memory_space<vmem>>, %arg2: memref<16x16xbf16, #tpu.memory_space<vmem>>, %arg3: memref<1x16x16xi32, #tpu.memory_space<vmem>>, %arg4: memref<1x16x16xf32, #tpu.memory_space<vmem>>, %arg5: memref<1x16x16xf32, #tpu.memory_space<vmem>>) attributes {dimension_semantics = [#tpu.dimension_semantics<parallel>], iteration_bounds = array<i64: 2>, scalar_prefetch = 0 : i64, scratch_operands = 0 : i64, tpu.core_type = #tpu.core_type<tc>, window_params = [{pipeline_mode = #tpu.pipeline_mode<synchronous>, transform_indices = @transform_0, window_bounds = array<i64: 16, 16>}, {pipeline_mode = #tpu.pipeline_mode<synchronous>, transform_indices = @transform_1, window_bounds = array<i64: 16, 16>}, {transform_indices = @transform_2, window_bounds = array<i64: 1, 16, 16>}, {transform_indices = @transform_3, window_bounds = array<i64: 1, 16, 16>}, {transform_indices = @transform_4, window_bounds = array<i64: 1, 16, 16>}]} {
    %c0 = arith.constant 0 : index
    %c0_0 = arith.constant 0 : index
    %c0_1 = arith.constant 0 : index
    %0 = vector.load %arg3[%c0, %c0_0, %c0_1] : memref<1x16x16xi32, #tpu.memory_space<vmem>>, vector<1x16x16xi32>
    %1 = vector.shape_cast %0 : vector<1x16x16xi32> to vector<16x16xi32>
    %c1_i32 = arith.constant 1 : i32
    %2 = vector.broadcast %c1_i32 : i32 to vector<16x16xi32>
    %3 = arith.subi %2, %1 : vector<16x16xi32>
    %4 = arith.sitofp %3 : vector<16x16xi32> to vector<16x16xbf16>
    %c0_2 = arith.constant 0 : index
    %c0_3 = arith.constant 0 : index
    %5 = vector.load %arg1[%c0_2, %c0_3] : memref<16x16xbf16, #tpu.memory_space<vmem>>, vector<16x16xbf16>
    %cst = arith.constant dense<0.000000e+00> : vector<16x16xf32>
    %6 = tpu.matmul %5, %4, %cst {dimension_numbers = #tpu.dot_dimension_numbers<[1], [0], [0], [1], [0, 0, 1, 1], [], []>} : vector<16x16xbf16>, vector<16x16xbf16>, vector<16x16xf32> -> vector<16x16xf32>
    %c0_4 = arith.constant 0 : index
    %c0_5 = arith.constant 0 : index
    %7 = vector.load %arg2[%c0_4, %c0_5] : memref<16x16xbf16, #tpu.memory_space<vmem>>, vector<16x16xbf16>
    %cst_6 = arith.constant dense<0.000000e+00> : vector<16x16xf32>
    %8 = tpu.matmul %4, %7, %cst_6 {dimension_numbers = #tpu.dot_dimension_numbers<[1], [0], [0], [1], [0, 0, 1, 1], [], []>} : vector<16x16xbf16>, vector<16x16xbf16>, vector<16x16xf32> -> vector<16x16xf32>
    %cst_7 = arith.constant 5.000000e-01 : f32
    %9 = vector.broadcast %cst_7 : f32 to vector<16x16xf32>
    %10 = arith.subf %6, %9 : vector<16x16xf32>
    %11 = vector.extract_strided_slice %6 {offsets = [15, 0], sizes = [1, 16], strides = [1, 1]} : vector<16x16xf32> to vector<1x16xf32>
    %cst_8 = arith.constant 9.99999997E-7 : f32
    %12 = vector.broadcast %cst_8 : f32 to vector<1x16xf32>
    %13 = arith.addf %11, %12 : vector<1x16xf32>
    %14 = vector.broadcast %13 : vector<1x16xf32> to vector<16x16xf32>
    %15 = arith.divf %10, %14 : vector<16x16xf32>
    %c0_9 = arith.constant 0 : index
    %c0_10 = arith.constant 0 : index
    %c0_11 = arith.constant 0 : index
    %16 = vector.load %arg5[%c0_9, %c0_10, %c0_11] : memref<1x16x16xf32, #tpu.memory_space<vmem>>, vector<1x16x16xf32>
    %17 = vector.shape_cast %16 : vector<1x16x16xf32> to vector<16x16xf32>
    %18 = vector.shape_cast %15 : vector<16x16xf32> to vector<1x16x16xf32>
    tpu.vector_store %arg5[%c0_9, %c0_10, %c0_11], %18 {strides = array<i32>} : memref<1x16x16xf32, #tpu.memory_space<vmem>>, vector<1x16x16xf32>,
    %cst_12 = arith.constant 5.000000e-01 : f32
    %19 = vector.broadcast %cst_12 : f32 to vector<16x16xf32>
    %20 = arith.subf %8, %19 : vector<16x16xf32>
    %21 = vector.extract_strided_slice %8 {offsets = [0, 15], sizes = [16, 1], strides = [1, 1]} : vector<16x16xf32> to vector<16x1xf32>
    %cst_13 = arith.constant 9.99999997E-7 : f32
    %22 = vector.broadcast %cst_13 : f32 to vector<16x1xf32>
    %23 = arith.addf %21, %22 : vector<16x1xf32>
    %24 = vector.broadcast %23 : vector<16x1xf32> to vector<16x16xf32>
    %25 = arith.divf %20, %24 : vector<16x16xf32>
    %c0_14 = arith.constant 0 : index
    %c0_15 = arith.constant 0 : index
    %c0_16 = arith.constant 0 : index
    %26 = vector.load %arg4[%c0_14, %c0_15, %c0_16] : memref<1x16x16xf32, #tpu.memory_space<vmem>>, vector<1x16x16xf32>
    %27 = vector.shape_cast %26 : vector<1x16x16xf32> to vector<16x16xf32>
    %28 = vector.shape_cast %25 : vector<16x16xf32> to vector<1x16x16xf32>
    tpu.vector_store %arg4[%c0_14, %c0_15, %c0_16], %28 {strides = array<i32>} : memref<1x16x16xf32, #tpu.memory_space<vmem>>, vector<1x16x16xf32>,
    return
  }
  func.func @transform_0(%arg0: i32) -> (i32, i32) {
    %c0_i32 = arith.constant 0 : i32
    %c0_i32_0 = arith.constant 0 : i32
    %c0_i32_1 = arith.constant 0 : i32
    return %c0_i32, %c0_i32_0 : i32, i32
  }
  func.func @transform_1(%arg0: i32) -> (i32, i32) {
    %c0_i32 = arith.constant 0 : i32
    %c0_i32_0 = arith.constant 0 : i32
    %c0_i32_1 = arith.constant 0 : i32
    return %c0_i32, %c0_i32_0 : i32, i32
  }
  func.func @transform_2(%arg0: i32) -> (i32, i32, i32) {
    %c0_i32 = arith.constant 0 : i32
    %c0_i32_0 = arith.constant 0 : i32
    %c0_i32_1 = arith.constant 0 : i32
    return %arg0, %c0_i32, %c0_i32_0 : i32, i32, i32
  }
  func.func @transform_3(%arg0: i32) -> (i32, i32, i32) {
    %c0_i32 = arith.constant 0 : i32
    %c0_i32_0 = arith.constant 0 : i32
    %c0_i32_1 = arith.constant 0 : i32
    return %arg0, %c0_i32, %c0_i32_0 : i32, i32, i32
  }
  func.func @transform_4(%arg0: i32) -> (i32, i32, i32) {
    %c0_i32 = arith.constant 0 : i32
    %c0_i32_0 = arith.constant 0 : i32
    %c0_i32_1 = arith.constant 0 : i32
    return %arg0, %c0_i32, %c0_i32_0 : i32, i32, i32
  }
}

</mosaic_0001>

<llo_original>
// kernel: tpu_custom_call.1
$region0: #{tpu_custom_call.1}
  #allocation0 [shape = 'u32[]', space=smem, size = 0x4, offset = 0x4, fixed_abs, tag = 'smem constant byte address 0x4 - core index']
  #allocation1 [shape = 'u32[72,128]{1,0:T(1,128)}', space=vmem, size = 0x9000, scoped, tag = 'internal scratch']
  %s0 = inlined_call_operand.hbm [shape: bf16[16,16], index: 0, kind: input, shape index: {}]
  %s1 = inlined_call_operand.hbm [shape: bf16[16,16], index: 1, kind: input, shape index: {}]
  %s2 = inlined_call_operand.hbm [shape: s32[2,16,16], index: 2, kind: input, shape index: {}]
  %s3 = inlined_call_operand.hbm [shape: f32[2,16,16], index: 3, kind: output, shape index: {0}]
  %s4 = inlined_call_operand.hbm [shape: f32[2,16,16], index: 4, kind: output, shape index: {1}]
  %5 = xla_tuple %s3, %s4
  %s6 = sld [smem:[#allocation0]]
  $region65: #{tpu_custom_call.1} parent=0
    _
  %s8 = ssub.s32 1, %s6
  %s9 = scalar_select 0, %s8, %s6
  $region1: #{tpu_custom_call.1} parent=0
    #allocation2 [shape = 'u8[4096]{0}', space=vmem, size = 0x1000, scoped, tag = 'input window, operand 0, single buffered']
    #allocation3 [shape = 's32[2]{0}', space=sflag, size = 0x8, scoped, tag = 'scoped memory for tpu_custom_call.1']
    #allocation4 [shape = 's32[2]{0}', space=sflag, size = 0x8, scoped, tag = 'scoped memory for tpu_custom_call.1']
    #allocation5 [shape = 'u8[4096]{0}', space=vmem, size = 0x1000, scoped, tag = 'input window, operand 1, single buffered']
    #allocation6 [shape = 's32[1]{0}', space=sflag, size = 0x4, scoped, tag = 'scoped memory for tpu_custom_call.1']
    #allocation7 [shape = 'u8[16384]{0}', space=vmem, size = 0x4000, scoped, tag = 'input window, operand 2']
    #allocation8 [shape = 'u8[16384]{0}', space=vmem, size = 0x4000, scoped, tag = 'output window, operand 0']
    #allocation9 [shape = 'u8[16384]{0}', space=vmem, size = 0x4000, scoped, tag = 'output window, operand 1']
    #allocation10 [shape = 's32[2]{0}', space=sflag, size = 0x8, scoped, tag = 'scoped memory for tpu_custom_call.1']
    %10 = vsyncpa [#allocation3], 0
    %11 = vsyncpa [#allocation6], 0
    %12 = vsyncpa [#allocation4], 0
    %s13 = scalar_lea.sflag [#allocation4], 1
    %14 = vsyncpa %s13, 0
    %15 = vsyncpa [#allocation10], 0
    %s16 = scalar_lea.sflag [#allocation10], 1
    %17 = vsyncpa %s16, 0
    loop: start=0, step=1, limit=4
    $region2: #{tpu_custom_call.1} parent=1 // loop_pre_header
      _
    $region3: #{tpu_custom_call.1} parent=1 // loop_header
      %s19 = sphi 0, %s23
      %p20 = scmp.ge.s32.totalorder %s19, 4
      %s27 = sphi 0, %s27
      %s29 = sphi 0, %s27
      %s30 = sphi 0, %s29
      %s44 = sphi 0, %s30
      %s48 = sphi 0, %s48
      %s50 = sphi 0, %s48
      %s51 = sphi 0, %s50
      %s65 = sphi 0, %s51
      %s71 = sphi 0, %s73
      %s74 = sphi 0, %s71
      %s75 = sphi 0, %s74
      %s91 = sphi 0, %s75
      %s97 = sphi 0, %s99
      %s100 = sphi 0, %s97
      %s101 = sphi 0, %s100
      %s117 = sphi 0, %s101
      %s123 = sphi 0, %s125
      %s126 = sphi 0, %s123
      %s127 = sphi 0, %s126
      %s143 = sphi 0, %s127
    $region4: #{tpu_custom_call.1} parent=1 // loop_header_branch
      %22 = sbr.rel (%p20) target = $region8
    $region5: #{tpu_custom_call.1} parent=1 // loop_body
      %s24 = ssub.s32 %s19, 1
      %s25 = ssub.s32 %s19, 2
      %s26 = sadd.s32 %s19, 1
      %s28 = sadd.s32 %s27, 1
      %p31 = scmp.eq.s32.totalorder %s19, 1
      %p32 = scmp.ne.s32.totalorder %s27, %s29
      %p33 = scmp.eq.s32.totalorder %s19, 0
      %p34 = por %p32, %p33
      %p35 = scmp.ne.s32.totalorder %s27, %s29
      %p36 = scmp.eq.s32.totalorder %s24, 1
      %p37 = por %p35, %p36
      %p38 = scmp.ne.s32.totalorder %s29, %s30
      %p39 = scmp.eq.s32.totalorder %s24, 0
      %p40 = por %p38, %p39
      %p41 = scmp.ne.s32.totalorder %s29, %s30
      %p42 = scmp.eq.s32.totalorder %s25, 1
      %p43 = por %p41, %p42
      %p45 = scmp.ne.s32.totalorder %s30, %s44
      %p46 = scmp.eq.s32.totalorder %s25, 0
      %p47 = por %p45, %p46
      %s49 = sadd.s32 %s48, 1
      %p52 = scmp.eq.s32.totalorder %s19, 1
      %p53 = scmp.ne.s32.totalorder %s48, %s50
      %p54 = scmp.eq.s32.totalorder %s19, 0
      %p55 = por %p53, %p54
      %p56 = scmp.ne.s32.totalorder %s48, %s50
      %p57 = scmp.eq.s32.totalorder %s24, 1
      %p58 = por %p56, %p57
      %p59 = scmp.ne.s32.totalorder %s50, %s51
      %p60 = scmp.eq.s32.totalorder %s24, 0
      %p61 = por %p59, %p60
      %p62 = scmp.ne.s32.totalorder %s50, %s51
      %p63 = scmp.eq.s32.totalorder %s25, 1
      %p64 = por %p62, %p63
      %p66 = scmp.ne.s32.totalorder %s51, %s65
      %p67 = scmp.eq.s32.totalorder %s25, 0
      %p68 = por %p66, %p67
      %s69 = ssub.s32 %s19, %s26
      %p70 = scmp.eq.s32.totalorder %s69, 0
      %s72 = sadd.s32 %s71, 1
      %s73 = scalar_select %p70, %s71, %s72
      %p76 = pneg %p70
      %p77 = scmp.eq.s32.totalorder %s19, 1
      %p78 = por %p76, %p77
      %p79 = scmp.ne.s32.totalorder %s71, %s74
      %p80 = scmp.eq.s32.totalorder %s19, 0
      %p81 = por %p79, %p80
      %p82 = scmp.ne.s32.totalorder %s71, %s74
      %p83 = scmp.eq.s32.totalorder %s24, 1
      %p84 = por %p82, %p83
      %p85 = scmp.ne.s32.totalorder %s74, %s75
      %p86 = scmp.eq.s32.totalorder %s24, 0
      %p87 = por %p85, %p86
      %p88 = scmp.ne.s32.totalorder %s74, %s75
      %p89 = scmp.eq.s32.totalorder %s25, 1
      %p90 = por %p88, %p89
      %p92 = scmp.ne.s32.totalorder %s75, %s91
      %p93 = scmp.eq.s32.totalorder %s25, 0
      %p94 = por %p92, %p93
      %s95 = ssub.s32 %s19, %s26
      %p96 = scmp.eq.s32.totalorder %s95, 0
      %s98 = sadd.s32 %s97, 1
      %s99 = scalar_select %p96, %s97, %s98
      %p102 = pneg %p96
      %p103 = scmp.eq.s32.totalorder %s19, 1
      %p104 = por %p102, %p103
      %p105 = scmp.ne.s32.totalorder %s97, %s100
      %p106 = scmp.eq.s32.totalorder %s19, 0
      %p107 = por %p105, %p106
      %p108 = scmp.ne.s32.totalorder %s97, %s100
      %p109 = scmp.eq.s32.totalorder %s24, 1
      %p110 = por %p108, %p109
      %p111 = scmp.ne.s32.totalorder %s100, %s101
      %p112 = scmp.eq.s32.totalorder %s24, 0
      %p113 = por %p111, %p112
      %p114 = scmp.ne.s32.totalorder %s100, %s101
      %p115 = scmp.eq.s32.totalorder %s25, 1
      %p116 = por %p114, %p115
      %p118 = scmp.ne.s32.totalorder %s101, %s117
      %p119 = scmp.eq.s32.totalorder %s25, 0
      %p120 = por %p118, %p119
      %s121 = ssub.s32 %s19, %s26
      %p122 = scmp.eq.s32.totalorder %s121, 0
      %s124 = sadd.s32 %s123, 1
      %s125 = scalar_select %p122, %s123, %s124
      %p128 = pneg %p122
      %p129 = scmp.eq.s32.totalorder %s19, 1
      %p130 = por %p128, %p129
      %p131 = scmp.ne.s32.totalorder %s123, %s126
      %p132 = scmp.eq.s32.totalorder %s19, 0
      %p133 = por %p131, %p132
      %p134 = scmp.ne.s32.totalorder %s123, %s126
      %p135 = scmp.eq.s32.totalorder %s24, 1
      %p136 = por %p134, %p135
      %p137 = scmp.ne.s32.totalorder %s126, %s127
      %p138 = scmp.eq.s32.totalorder %s24, 0
      %p139 = por %p137, %p138
      %p140 = scmp.ne.s32.totalorder %s126, %s127
      %p141 = scmp.eq.s32.totalorder %s25, 1
      %p142 = por %p140, %p141
      %p144 = scmp.ne.s32.totalorder %s127, %s143
      %p145 = scmp.eq.s32.totalorder %s25, 0
      %p146 = por %p144, %p145
      %p147 = scmp.le.s32.totalorder 1, %s19
      %p148 = scmp.lt.s32.totalorder %s19, 3
      %p149 = pnand %p147, %p148
      %p150 = pneg %p149
      // Predicated region
      $region9: #{tpu_custom_call.1} parent=5 // pred_check
        _
      $region10: #{tpu_custom_call.1} parent=5 // pred_check_branch
        %152 = sbr.rel (%p149) target = $region12
      $region11: #{tpu_custom_call.1} parent=5 // pred_region
        %s153 = ssub.s32 %s19, 1
        // Predicated region
        $region13: #{tpu_custom_call.1} parent=11 // pred_check
          %p154 = pneg %p40
        $region14: #{tpu_custom_call.1} parent=11 // pred_check_branch
          %156 = sbr.rel (%p154) target = $region16
        $region15: #{tpu_custom_call.1} parent=11 // pred_region
          %158 = vsyncadd [#allocation3], 0
          %s159 = sshll.u32 %s0, 4
          %s160 = int_to_ptr.hbm [resolvable:$true] %s159
          %s161 = sshll.u32 [#allocation2], 4
          %s162 = int_to_ptr.vmem [resolvable:$true] %s161
          %167 = dma.hbm_to_vmem [thread:$0]  %s160, 128, %s162, [#allocation3], 64, 64, 4
        $region16: #{tpu_custom_call.1} parent=11 // pred_fallthru
          _
        // Predicated region
        $region17: #{tpu_custom_call.1} parent=11 // pred_check
          %p168 = pneg %p61
        $region18: #{tpu_custom_call.1} parent=11 // pred_check_branch
          %170 = sbr.rel (%p168) target = $region20
        $region19: #{tpu_custom_call.1} parent=11 // pred_region
          %172 = vsyncadd [#allocation6], 0
          %s173 = sshll.u32 %s1, 4
          %s174 = int_to_ptr.hbm [resolvable:$true] %s173
          %s175 = sshll.u32 [#allocation5], 4
          %s176 = int_to_ptr.vmem [resolvable:$true] %s175
          %181 = dma.hbm_to_vmem [thread:$0]  %s174, 128, %s176, [#allocation6], 64, 64, 4
        $region20: #{tpu_custom_call.1} parent=11 // pred_fallthru
          _
      $region12: #{tpu_custom_call.1} parent=5 // pred_fallthru
        _
      %p182 = scmp.lt.s32.totalorder %s19, 2
      // Predicated region
      $region21: #{tpu_custom_call.1} parent=5 // pred_check
        %p183 = pneg %p182
      $region22: #{tpu_custom_call.1} parent=5 // pred_check_branch
        %185 = sbr.rel (%p183) target = $region24
      $region23: #{tpu_custom_call.1} parent=5 // pred_region
        // Predicated region
        $region25: #{tpu_custom_call.1} parent=23 // pred_check
          %p186 = pneg %p81
        $region26: #{tpu_custom_call.1} parent=23 // pred_check_branch
          %188 = sbr.rel (%p186) target = $region28
        $region27: #{tpu_custom_call.1} parent=23 // pred_region
          %s189 = sand.u32 %s19, 1
          %s190 = scalar_lea.sflag [#allocation3], %s189
          %s191 = sand.u32 %s71, 1
          %s192 = smul.addr %s191, 16
          %s193 = scalar_lea.vmem [#allocation7], %s192
          %195 = vsyncadd %s190, 0
          %s196 = smul.addr %s19, 2
          %s197 = smul.addr %s196, 8
          %s198 = scalar_lea.hbm %s2, %s197
          %s199 = sshll.u32 %s198, 4
          %s200 = int_to_ptr.hbm [resolvable:$true] %s199
          %s201 = sshll.u32 %s193, 4
          %s202 = int_to_ptr.vmem [resolvable:$true] %s201
          %207 = dma.hbm_to_vmem [thread:$0]  %s200, 256, %s202, %s190, 128, 128, 8
        $region28: #{tpu_custom_call.1} parent=23 // pred_fallthru
          _
      $region24: #{tpu_custom_call.1} parent=5 // pred_fallthru
        _
      %p208 = scmp.le.s32.totalorder 1, %s19
      %p209 = scmp.lt.s32.totalorder %s19, 3
      %p210 = pnand %p208, %p209
      %p211 = pneg %p210
      // Predicated region
      $region29: #{tpu_custom_call.1} parent=5 // pred_check
        _
      $region30: #{tpu_custom_call.1} parent=5 // pred_check_branch
        %213 = sbr.rel (%p210) target = $region32
      $region31: #{tpu_custom_call.1} parent=5 // pred_region
        %s214 = ssub.s32 %s19, 1
        // Predicated region
        $region33: #{tpu_custom_call.1} parent=31 // pred_check
          %p215 = pneg %p40
        $region34: #{tpu_custom_call.1} parent=31 // pred_check_branch
          %217 = sbr.rel (%p215) target = $region36
        $region35: #{tpu_custom_call.1} parent=31 // pred_region
          %219 = dma.done [#allocation3], 128
        $region36: #{tpu_custom_call.1} parent=31 // pred_fallthru
          _
        // Predicated region
        $region37: #{tpu_custom_call.1} parent=31 // pred_check
          %p220 = pneg %p61
        $region38: #{tpu_custom_call.1} parent=31 // pred_check_branch
          %222 = sbr.rel (%p220) target = $region40
        $region39: #{tpu_custom_call.1} parent=31 // pred_region
          %224 = dma.done [#allocation6], 128
        $region40: #{tpu_custom_call.1} parent=31 // pred_fallthru
          _
        %s225 = sand.u32 %s24, 1
        %s226 = scalar_lea.sflag [#allocation3], %s225
        %s227 = sand.u32 %s74, 1
        %s228 = smul.addr %s227, 16
        %s229 = scalar_lea.vmem [#allocation7], %s228
        // Predicated region
        $region41: #{tpu_custom_call.1} parent=31 // pred_check
          %p230 = pneg %p87
        $region42: #{tpu_custom_call.1} parent=31 // pred_check_branch
          %232 = sbr.rel (%p230) target = $region44
        $region43: #{tpu_custom_call.1} parent=31 // pred_region
          %234 = dma.done %s226, 256
        $region44: #{tpu_custom_call.1} parent=31 // pred_fallthru
          _
        %p235 = pneg %p40
        %p236 = pneg %p37
        %p237 = pneg %p61
        %p238 = pneg %p58
        %s239 = sand.u32 %s24, 1
        %s240 = scalar_lea.sflag [#allocation3], %s239
        %s241 = sand.u32 %s74, 1
        %s242 = smul.addr %s241, 16
        %s243 = scalar_lea.vmem [#allocation7], %s242
        %p244 = pneg %p87
        %p245 = pneg %p84
        %p246 = pneg %p113
        %p247 = pneg %p110
        %s248 = sand.u32 %s100, 1
        %s249 = scalar_lea.sflag [#allocation4], %s248
        %s250 = sand.u32 %s100, 1
        %s251 = smul.addr %s250, 16
        %s252 = scalar_lea.vmem [#allocation8], %s251
        %p253 = pneg %p139
        %p254 = pneg %p136
        %s255 = sand.u32 %s126, 1
        %s256 = scalar_lea.sflag [#allocation10], %s255
        %s257 = sand.u32 %s126, 1
        %s258 = smul.addr %s257, 16
        %s259 = scalar_lea.vmem [#allocation9], %s258
        %v261 = vld [vmem:[%s229] sm:$0xff]
        %v262 = vld [vmem:[%s229 + $0x8] sm:$0xff]
        %v263 = vsub.s32 1, %v261
        %v264 = vsub.s32 1, %v262
        %v265 = vcvt.s32.f32 %v263
        %v266 = vcvt.s32.f32 %v264
        %v267 = vpack.c.bf16 %v266, %v265
        %v268 = vld [vmem:[#allocation2] sm:$0xf]
        %v269 = vld [vmem:[#allocation2 + $0x4] sm:$0xf]
        %v272 = vunpack.c.l.b16 %v268
        %v273 = vunpack.c.l.b16 %v269
        %v274 = vpack.c.b16 %v273, %v272
        %vm275 = vcmask 130048
        %v277 = vsel %vm275, %v274, 0
        %279 = vmatpush.bf16.msra.mxu0 0
        %280 = vmatpush.bf16.msra.mxu0 0
        %281 = vmatpush.bf16.msra.mxu0 0
        %282 = vmatpush.bf16.msra.mxu0 0
        %283 = vmatpush.bf16.msra.mxu0 0
        %284 = vmatpush.bf16.msra.mxu0 0
        %285 = vmatpush.bf16.msra.mxu0 0
        %286 = vmatpush.bf16.msra.mxu0 %v267
        %287 = vmatmul.bf16.gmra.mxu0 %v277
        %v288 = vpop.f32.mrf.mxu0
        %v289 = vadd.f32 0.0, %v288
        %v290 = vpop.f32.mrf.mxu0
        %v291 = vadd.f32 0.0, %v290
        %292 = vdwg.mxu0
        %v293 = vld [vmem:[#allocation5] sm:$0xf]
        %v294 = vld [vmem:[#allocation5 + $0x4] sm:$0xf]
        %v297 = vunpack.c.l.b16 %v293
        %v298 = vunpack.c.l.b16 %v294
        %v299 = vpack.c.b16 %v298, %v297
        %v302 = vsel %vm275, %v267, 0
        %304 = vmatpush.bf16.msra.mxu0 0
        %305 = vmatpush.bf16.msra.mxu0 0
        %306 = vmatpush.bf16.msra.mxu0 0
        %307 = vmatpush.bf16.msra.mxu0 0
        %308 = vmatpush.bf16.msra.mxu0 0
        %309 = vmatpush.bf16.msra.mxu0 0
        %310 = vmatpush.bf16.msra.mxu0 0
        %311 = vmatpush.bf16.msra.mxu0 %v299
        %312 = vmatmul.bf16.gmra.mxu0 %v302
        %v313 = vpop.f32.mrf.mxu0
        %v314 = vadd.f32 0.0, %v313
        %v315 = vpop.f32.mrf.mxu0
        %v316 = vadd.f32 0.0, %v315
        %317 = vdwg.mxu0
        %v318 = vsub.f32 %v289, 0.5
        %v319 = vsub.f32 %v291, 0.5
        %v320 = vadd.f32 %v291, 1e-06
        %v321 = vperm.slane %v320, 7
        %v322 = vrcp.pop %v321
        %v323 = vmul.f32 %v321, %v322
        %v324 = vsub.f32 1.0, %v323
        %v325 = vmul.f32 %v322, %v324
        %v326 = vadd.f32 %v322, %v325
        %vm327 = vweird.f32 %v321
        %vm328 = vweird.f32 %v322
        %vm329 = vmor %vm327, %vm328
        %v330 = vsel %vm329, %v322, %v326
        %v331 = vand.u32 2147483647, %v321
        %vm332 = vcmp.eq.f32.partialorder %v331, 8.507059e+37
        %v333 = vand.u32 %v321, 2147483648
        %v334 = vor.u32 1.1754944e-38, %v333
        %v335 = vsel %vm332, %v334, %v330
        %v336 = vmul.f32 %v318, %v335
        %v337 = vmul.f32 %v319, %v335
        %338 = vst.msk [vmem:[%s259] sm:$0xff] %vm275, %v336
        %339 = vst.msk [vmem:[%s259 + $0x8] sm:$0xff] %vm275, %v337
        %v340 = vsub.f32 %v314, 0.5
        %v341 = vsub.f32 %v316, 0.5
        %v342 = vadd.f32 %v314, 1e-06
        %v343 = vadd.f32 %v316, 1e-06
        %345 = vset.pattern.permute.xlu0 15
        %346 = vperm.xlu0 %345, %v342
        %v347 = vpop.permute.xlu0 %346
        %350 = vset.pattern.permute.xlu0 15
        %351 = vperm.xlu0 %350, %v343
        %v352 = vpop.permute.xlu0 %351
        %v354 = vrcp.pop %v347
        %v355 = vmul.f32 %v347, %v354
        %v356 = vsub.f32 1.0, %v355
        %v357 = vmul.f32 %v354, %v356
        %v358 = vadd.f32 %v354, %v357
        %vm359 = vweird.f32 %v347
        %vm360 = vweird.f32 %v354
        %vm361 = vmor %vm359, %vm360
        %v362 = vsel %vm361, %v354, %v358
        %v363 = vand.u32 2147483647, %v347
        %vm364 = vcmp.eq.f32.partialorder %v363, 8.507059e+37
        %v365 = vand.u32 %v347, 2147483648
        %v366 = vor.u32 1.1754944e-38, %v365
        %v367 = vsel %vm364, %v366, %v362
        %v368 = vmul.f32 %v340, %v367
        %v369 = vrcp.pop %v352
        %v370 = vmul.f32 %v352, %v369
        %v371 = vsub.f32 1.0, %v370
        %v372 = vmul.f32 %v369, %v371
        %v373 = vadd.f32 %v369, %v372
        %vm374 = vweird.f32 %v352
        %vm375 = vweird.f32 %v369
        %vm376 = vmor %vm374, %vm375
        %v377 = vsel %vm376, %v369, %v373
        %v378 = vand.u32 2147483647, %v352
        %vm379 = vcmp.eq.f32.partialorder %v378, 8.507059e+37
        %v380 = vand.u32 %v352, 2147483648
        %v381 = vor.u32 1.1754944e-38, %v380
        %v382 = vsel %vm379, %v381, %v377
        %v383 = vmul.f32 %v341, %v382
        %384 = vst.msk [vmem:[%s252] sm:$0xff] %vm275, %v368
        %385 = vst.msk [vmem:[%s252 + $0x8] sm:$0xff] %vm275, %v383
        %s386 = sand.u32 %s100, 1
        %s387 = scalar_lea.sflag [#allocation4], %s386
        %s388 = sand.u32 %s100, 1
        %s389 = smul.addr %s388, 16
        %s390 = scalar_lea.vmem [#allocation8], %s389
        %s391 = sand.u32 %s126, 1
        %s392 = scalar_lea.sflag [#allocation10], %s391
        %s393 = sand.u32 %s126, 1
        %s394 = smul.addr %s393, 16
        %s395 = scalar_lea.vmem [#allocation9], %s394
        // Predicated region
        $region45: #{tpu_custom_call.1} parent=31 // pred_check
          %p396 = pneg %p110
        $region46: #{tpu_custom_call.1} parent=31 // pred_check_branch
          %398 = sbr.rel (%p396) target = $region48
        $region47: #{tpu_custom_call.1} parent=31 // pred_region
          %400 = vsyncadd %s387, 0
          %s401 = smul.addr %s24, 2
          %s402 = smul.addr %s401, 8
          %s403 = scalar_lea.hbm %s3, %s402
          %s404 = sshll.u32 %s390, 4
          %s405 = int_to_ptr.vmem [resolvable:$true] %s404
          %s406 = sshll.u32 %s403, 4
          %s407 = int_to_ptr.hbm [resolvable:$true] %s406
          %412 = dma.vmem_to_hbm [thread:$0]  %s405, 256, %s407, %s387, 128, 128, 8
        $region48: #{tpu_custom_call.1} parent=31 // pred_fallthru
          _
        // Predicated region
        $region49: #{tpu_custom_call.1} parent=31 // pred_check
          %p413 = pneg %p136
        $region50: #{tpu_custom_call.1} parent=31 // pred_check_branch
          %415 = sbr.rel (%p413) target = $region52
        $region51: #{tpu_custom_call.1} parent=31 // pred_region
          %417 = vsyncadd %s392, 0
          %s418 = smul.addr %s24, 2
          %s419 = smul.addr %s418, 8
          %s420 = scalar_lea.hbm %s4, %s419
          %s421 = sshll.u32 %s395, 4
          %s422 = int_to_ptr.vmem [resolvable:$true] %s421
          %s423 = sshll.u32 %s420, 4
          %s424 = int_to_ptr.hbm [resolvable:$true] %s423
          %429 = dma.vmem_to_hbm [thread:$0]  %s422, 256, %s424, %s392, 128, 128, 8
        $region52: #{tpu_custom_call.1} parent=31 // pred_fallthru
          _
      $region32: #{tpu_custom_call.1} parent=5 // pred_fallthru
        _
      %p430 = scmp.le.s32.totalorder 2, %s19
      // Predicated region
      $region53: #{tpu_custom_call.1} parent=5 // pred_check
        %p431 = pneg %p430
      $region54: #{tpu_custom_call.1} parent=5 // pred_check_branch
        %433 = sbr.rel (%p431) target = $region56
      $region55: #{tpu_custom_call.1} parent=5 // pred_region
        %s434 = ssub.s32 %s19, 2
        // Predicated region
        $region57: #{tpu_custom_call.1} parent=55 // pred_check
          %p435 = pneg %p116
        $region58: #{tpu_custom_call.1} parent=55 // pred_check_branch
          %437 = sbr.rel (%p435) target = $region60
        $region59: #{tpu_custom_call.1} parent=55 // pred_region
          %s438 = sand.u32 %s101, 1
          %s439 = scalar_lea.sflag [#allocation4], %s438
          %s440 = sand.u32 %s101, 1
          %s441 = smul.addr %s440, 16
          %s442 = scalar_lea.vmem [#allocation8], %s441
          %444 = dma.done %s439, 256
        $region60: #{tpu_custom_call.1} parent=55 // pred_fallthru
          _
        // Predicated region
        $region61: #{tpu_custom_call.1} parent=55 // pred_check
          %p445 = pneg %p142
        $region62: #{tpu_custom_call.1} parent=55 // pred_check_branch
          %447 = sbr.rel (%p445) target = $region64
        $region63: #{tpu_custom_call.1} parent=55 // pred_region
          %s448 = sand.u32 %s127, 1
          %s449 = scalar_lea.sflag [#allocation10], %s448
          %s450 = sand.u32 %s127, 1
          %s451 = smul.addr %s450, 16
          %s452 = scalar_lea.vmem [#allocation9], %s451
          %454 = dma.done %s449, 256
        $region64: #{tpu_custom_call.1} parent=55 // pred_fallthru
          _
      $region56: #{tpu_custom_call.1} parent=5 // pred_fallthru
        _
    $region6: #{tpu_custom_call.1} parent=1 // loop_footer
      %s23 = sadd.s32 1, %s19
    $region7: #{tpu_custom_call.1} parent=1 // loop_footer_branch
      %18 = sbr.rel target = $region3
    $region8: #{tpu_custom_call.1} parent=1 // loop_exit
      _
    %455 = vsyncpa [#allocation3], 1
    %s456 = scalar_lea.sflag [#allocation3], 1
    %457 = vsyncpa %s456, 1
    %458 = vsyncpa [#allocation6], 1
    %459 = vsyncpa [#allocation4], 1
    %s460 = scalar_lea.sflag [#allocation4], 1
    %461 = vsyncpa %s460, 1
    %462 = vsyncpa [#allocation10], 1
    %s463 = scalar_lea.sflag [#allocation10], 1
    %464 = vsyncpa %s463, 1

</llo_original>
